<compile_context>
chip_gen: v6e
topology: v6e:2x2x1
jax: 0.10.0
libtpu: 0.0.40
codegen_flags: <defaults>
</compile_context>

<pallas_src>
import math

import jax
import jax.numpy as jnp
from jax.experimental import pallas as pl
from jax.experimental.pallas import tpu as pltpu

EPS = 1e-5  # nn.InstanceNorm2d default eps
_SMALL_PROBLEM_BYTES = 1 << 20  # below this, plain XLA beats a kernel launch


# ------------------------------------------------------------------ helpers
def _round_up(x, m):
    return -(-x // m) * m


def _vmem_budgets():
    """Generation-aware scoped-VMEM limit and double-buffered block budget."""
    try:
        vmem = int(pltpu.get_tpu_info().vmem_capacity_bytes)
    except Exception:
        vmem = 64 * 1024 * 1024  # conservative: v7x per-TensorCore VMEM
    limit = min(int(vmem * 0.75), vmem - 8 * 1024 * 1024)  # headroom for scratch
    block_budget = int(limit * 0.85)
    return limit, block_budget


def _pick_rows(nc, hw, itemsize, block_budget_bytes):
    """Row-tile size (multiple of 8) for the (NC, HW) view.

    Targets 4-8 grid steps (pipelining; even count helps v7x's 2 TCs) while
    keeping each block multi-MiB and the double-buffered in+out blocks inside
    the VMEM budget.  Returns None if even an 8-row block busts the budget.
    """
    per_row = 2 * 2 * itemsize * hw              # 2x-buffered input + output
    max_rows = (block_budget_bytes // per_row) // 8 * 8
    if max_rows < 8:
        # TODO(synk): add an HW-split ("arbitrary") grid axis with running
        # sum/sumsq scratch so very large H*W doesn't force the XLA fallback.
        return None
    nc8 = _round_up(nc, 8)
    max_rows = min(max_rows, nc8)

    # Smallest row count whose block is still ~2 MiB.
    min_big_rows = _round_up(pl.cdiv(2 * 1024 * 1024, hw * itemsize), 8)

    rows = max_rows
    for target_steps in (8, 6, 4, 2):
        cand = min(max_rows, _round_up(pl.cdiv(nc, target_steps), 8))
        if cand >= min_big_rows or cand == max_rows:
            rows = cand
            break

    # Prefer an even grid-step count so v7x's two TensorCores stay balanced.
    steps = pl.cdiv(nc, rows)
    if steps > 1 and steps % 2 == 1:
        cand = _round_up(pl.cdiv(nc, steps + 1), 8)
        if cand >= 8 and pl.cdiv(nc, cand) % 2 == 0:
            rows = cand
    return rows


# ------------------------------------------------------------------ kernel
def _adain_kernel(gamma_ref, beta_ref, x_ref, o_ref):
    # gamma/beta: (rows, 1) per-step blocks; x/o: (rows, HW) tiles.
    gamma = gamma_ref[...].astype(jnp.float32)
    beta = beta_ref[...].astype(jnp.float32)

    x = x_ref[...].astype(jnp.float32)
    mean = jnp.mean(x, axis=-1, keepdims=True)
    var = jnp.mean((x - mean) ** 2, axis=-1, keepdims=True)  # biased, like InstanceNorm2d

    # folded affine: out = x * a + b  (rsqrt goes to the EUP)
    a = gamma * jax.lax.rsqrt(var + EPS)                      # (rows, 1)
    b = beta - mean * a                                       # (rows, 1)
    o_ref[...] = (x * a + b).astype(o_ref.dtype)


# ------------------------------------------------------------------ wrapper
def _style_projection(style, weight_orig, bias, C):
    """EqualLinear forward: style @ (weight_orig * sqrt(2/fan_in)).T + bias."""
    S = style.shape[1]
    scale = math.sqrt(2.0 / S)  # EqualLR: fan_in = style_dim * 1
    st = style.astype(jnp.float32) @ (weight_orig.astype(jnp.float32).T * scale)
    st = st + bias.astype(jnp.float32)[None, :]               # (N, 2C)
    return st[:, :C], st[:, C:]                               # gamma, beta (N, C)


def _xla_normalize(x, gamma, beta):
    xf = x.astype(jnp.float32)
    mean = xf.mean(axis=(2, 3), keepdims=True)
    var = ((xf - mean) ** 2).mean(axis=(2, 3), keepdims=True)
    a = gamma[:, :, None, None] * jax.lax.rsqrt(var + EPS)
    b = beta[:, :, None, None] - mean * a
    return (xf * a + b).astype(x.dtype)


def adaptive_instance_norm(x, style, weight_orig, bias, *, force_pallas=False):
    """x: (N, C, H, W), style: (N, S), weight_orig: (2C, S), bias: (2C,)."""
    N, C, H, W = x.shape
    HW = H * W
    NC = N * C

    gamma2d, beta2d = _style_projection(style, weight_orig, bias, C)  # (N, C) each

    itemsize = jnp.dtype(x.dtype).itemsize
    vmem_limit, block_budget = _vmem_budgets()
    rows = _pick_rows(NC, HW, itemsize, block_budget)

    small = NC * HW * itemsize < _SMALL_PROBLEM_BYTES
    if (rows is None) or NC < 8 or (small and not force_pallas):
        # Tiny problem (launch overhead dominates) or tile can't fit VMEM.
        return _xla_normalize(x, gamma2d, beta2d)

    gamma = gamma2d.reshape(NC, 1)  # row order matches x.reshape(NC, HW)
    beta = beta2d.reshape(NC, 1)
    x2 = x.reshape(NC, HW)

    out2 = pl.pallas_call(
        _adain_kernel,
        out_shape=jax.ShapeDtypeStruct((NC, HW), x.dtype),
        grid=(pl.cdiv(NC, rows),),
        in_specs=[
            pl.BlockSpec((rows, 1), lambda i: (i, 0)),    # gamma per-step block
            pl.BlockSpec((rows, 1), lambda i: (i, 0)),    # beta per-step block
            pl.BlockSpec((rows, HW), lambda i: (i, 0)),   # x tile
        ],
        out_specs=pl.BlockSpec((rows, HW), lambda i: (i, 0)),
        compiler_params=pltpu.CompilerParams(
            dimension_semantics=("parallel",),
            vmem_limit_bytes=vmem_limit,
        ),
    )(gamma, beta, x2)

    return out2.reshape(N, C, H, W)


# ------------------------------------------------------------------ reference
def _reference(x, style, weight_orig, bias):
    C = x.shape[1]
    scale = math.sqrt(2.0 / style.shape[1])
    st = style @ (weight_orig * scale).T + bias
    gamma = st[:, :C][:, :, None, None]
    beta = st[:, C:][:, :, None, None]
    mean = x.mean(axis=(2, 3), keepdims=True)
    var = x.var(axis=(2, 3), keepdims=True)  # biased, like InstanceNorm2d
    norm = (x - mean) / jnp.sqrt(var + EPS)
    return gamma * norm + beta


# ------------------------------------------------------------------ main
if __name__ == "__main__":
    N, C, H, W = 2, 4, 16, 16
    STYLE_DIM = 8

    key = jax.random.PRNGKey(0)
    kx, ks, kw = jax.random.split(key, 3)

    x = jax.random.normal(kx, (N, C, H, W), dtype=jnp.float32)
    style = jax.random.normal(ks, (N, STYLE_DIM), dtype=jnp.float32)

    # EqualLinear init: weight_orig ~ N(0,1); bias[:C]=1, bias[C:]=0
    weight_orig = jax.random.normal(kw, (2 * C, STYLE_DIM), dtype=jnp.float32)
    bias = jnp.concatenate(
        [jnp.ones((C,), jnp.float32), jnp.zeros((C,), jnp.float32)]
    )

    ref = _reference(x, style, weight_orig, bias)

    # Pallas path (forced; the demo shape is below the small-problem threshold).
    out = adaptive_instance_norm(x, style, weight_orig, bias, force_pallas=True)
    out = jax.block_until_ready(out)
    assert out.shape == (N, C, H, W)
    assert jnp.allclose(out, ref, rtol=1e-4, atol=1e-4), "pallas path mismatch"

    # Default path (XLA fallback at this tiny shape) must also match.
    out_fb = adaptive_instance_norm(x, style, weight_orig, bias)
    out_fb = jax.block_until_ready(out_fb)
    assert jnp.allclose(out_fb, ref, rtol=1e-4, atol=1e-4), "fallback mismatch"

    print("KERNEL_OK")
</pallas_src>

<mosaic_0001>
module attributes {stable_mosaic.version = 11 : i64} {
  func.func @_adain_kernel(%arg0: i32, %arg1: memref<8x1xf32, #tpu.memory_space<vmem>>, %arg2: memref<8x1xf32, #tpu.memory_space<vmem>>, %arg3: memref<8x256xf32, #tpu.memory_space<vmem>>, %arg4: memref<8x256xf32, #tpu.memory_space<vmem>>) attributes {dimension_semantics = [#tpu.dimension_semantics<parallel>], iteration_bounds = array<i64: 1>, scalar_prefetch = 0 : i64, scratch_operands = 0 : i64, tpu.core_type = #tpu.core_type<tc>, window_params = [{transform_indices = @transform_0, window_bounds = array<i64: 8, 1>}, {transform_indices = @transform_1, window_bounds = array<i64: 8, 1>}, {transform_indices = @transform_2, window_bounds = array<i64: 8, 256>}, {transform_indices = @transform_3, window_bounds = array<i64: 8, 256>}]} {
    %c0 = arith.constant 0 : index
    %c0_0 = arith.constant 0 : index
    %0 = vector.load %arg1[%c0, %c0_0] : memref<8x1xf32, #tpu.memory_space<vmem>>, vector<8x1xf32>
    %c0_1 = arith.constant 0 : index
    %c0_2 = arith.constant 0 : index
    %1 = vector.load %arg2[%c0_1, %c0_2] : memref<8x1xf32, #tpu.memory_space<vmem>>, vector<8x1xf32>
    %c0_3 = arith.constant 0 : index
    %c0_4 = arith.constant 0 : index
    %2 = vector.load %arg3[%c0_3, %c0_4] : memref<8x256xf32, #tpu.memory_space<vmem>>, vector<8x256xf32>
    %cst = arith.constant dense<0.000000e+00> : vector<8xf32>
    %3 = vector.multi_reduction <add>, %2, %cst [1] : vector<8x256xf32> to vector<8xf32>
    %4 = vector.shape_cast %3 : vector<8xf32> to vector<8x1xf32>
    %cst_5 = arith.constant 2.560000e+02 : f32
    %5 = vector.broadcast %cst_5 : f32 to vector<8x1xf32>
    %6 = arith.divf %4, %5 : vector<8x1xf32>
    %7 = vector.broadcast %6 : vector<8x1xf32> to vector<8x256xf32>
    %8 = arith.subf %2, %7 : vector<8x256xf32>
    %9 = arith.mulf %8, %8 : vector<8x256xf32>
    %cst_6 = arith.constant dense<0.000000e+00> : vector<8xf32>
    %10 = vector.multi_reduction <add>, %9, %cst_6 [1] : vector<8x256xf32> to vector<8xf32>
    %11 = vector.shape_cast %10 : vector<8xf32> to vector<8x1xf32>
    %cst_7 = arith.constant 2.560000e+02 : f32
    %12 = vector.broadcast %cst_7 : f32 to vector<8x1xf32>
    %13 = arith.divf %11, %12 : vector<8x1xf32>
    %cst_8 = arith.constant 9.99999974E-6 : f32
    %14 = vector.broadcast %cst_8 : f32 to vector<8x1xf32>
    %15 = arith.addf %13, %14 : vector<8x1xf32>
    %16 = math.rsqrt %15 : vector<8x1xf32>
    %17 = arith.mulf %0, %16 : vector<8x1xf32>
    %18 = arith.mulf %6, %17 : vector<8x1xf32>
    %19 = arith.subf %1, %18 : vector<8x1xf32>
    %20 = vector.broadcast %17 : vector<8x1xf32> to vector<8x256xf32>
    %21 = arith.mulf %2, %20 : vector<8x256xf32>
    %22 = vector.broadcast %19 : vector<8x1xf32> to vector<8x256xf32>
    %23 = arith.addf %21, %22 : vector<8x256xf32>
    %c0_9 = arith.constant 0 : index
    %c0_10 = arith.constant 0 : index
    %24 = vector.load %arg4[%c0_9, %c0_10] : memref<8x256xf32, #tpu.memory_space<vmem>>, vector<8x256xf32>
    tpu.vector_store %arg4[%c0_9, %c0_10], %23 {strides = array<i32>} : memref<8x256xf32, #tpu.memory_space<vmem>>, vector<8x256xf32>,
    return
  }
  func.func @transform_0(%arg0: i32) -> (i32, i32) {
    %c0_i32 = arith.constant 0 : i32
    %c0_i32_0 = arith.constant 0 : i32
    return %arg0, %c0_i32 : i32, i32
  }
  func.func @transform_1(%arg0: i32) -> (i32, i32) {
    %c0_i32 = arith.constant 0 : i32
    %c0_i32_0 = arith.constant 0 : i32
    return %arg0, %c0_i32 : i32, i32
  }
  func.func @transform_2(%arg0: i32) -> (i32, i32) {
    %c0_i32 = arith.constant 0 : i32
    %c0_i32_0 = arith.constant 0 : i32
    return %arg0, %c0_i32 : i32, i32
  }
  func.func @transform_3(%arg0: i32) -> (i32, i32) {
    %c0_i32 = arith.constant 0 : i32
    %c0_i32_0 = arith.constant 0 : i32
    return %arg0, %c0_i32 : i32, i32
  }
}

</mosaic_0001>

<llo_original>
// kernel: tpu_custom_call.1
$region0: #{tpu_custom_call.1}
  #allocation0 [shape = 'u32[]', space=smem, size = 0x4, offset = 0x4, fixed_abs, tag = 'smem constant byte address 0x4 - core index']
  #allocation1 [shape = 'u32[144,128]{1,0:T(1,128)}', space=vmem, size = 0x12000, scoped, tag = 'internal scratch']
  %s0 = inlined_call_operand.vmem [shape: f32[8,1], index: 0, kind: input, shape index: {}]
  %s1 = inlined_call_operand.vmem [shape: f32[8,1], index: 1, kind: input, shape index: {}]
  %s2 = inlined_call_operand.vmem [shape: f32[8,256], index: 2, kind: input, shape index: {}]
  %s3 = inlined_call_operand.hbm [shape: f32[8,256], index: 3, kind: output, shape index: {}]
  %s4 = sld [smem:[#allocation0]]
  $region22: #{tpu_custom_call.1} parent=0
    _
  %s6 = ssub.s32 1, %s4
  %s7 = scalar_select 0, %s6, %s4
  $region1: #{tpu_custom_call.1} parent=0
    #allocation2 [shape = 'u8[8192]{0}', space=vmem, size = 0x2000, scoped, tag = 'output window, operand 0, single buffered']
    #allocation3 [shape = 's32[1]{0}', space=sflag, size = 0x4, scoped, tag = 'scoped memory for tpu_custom_call.1']
    %8 = vsyncpa [#allocation3], 0
    // Predicated region
    $region2: #{tpu_custom_call.1} parent=1 // pred_check
      _
    $region3: #{tpu_custom_call.1} parent=1 // pred_check_branch
      %10 = sbr.rel (0) target = $region5
    $region4: #{tpu_custom_call.1} parent=1 // pred_region
      _
    $region5: #{tpu_custom_call.1} parent=1 // pred_fallthru
      _
    // Predicated region
    $region6: #{tpu_custom_call.1} parent=1 // pred_check
      _
    $region7: #{tpu_custom_call.1} parent=1 // pred_check_branch
      %12 = sbr.rel (0) target = $region9
    $region8: #{tpu_custom_call.1} parent=1 // pred_region
      _
    $region9: #{tpu_custom_call.1} parent=1 // pred_fallthru
      _
    // Predicated region
    $region10: #{tpu_custom_call.1} parent=1 // pred_check
      _
    $region11: #{tpu_custom_call.1} parent=1 // pred_check_branch
      %14 = sbr.rel (0) target = $region13
    $region12: #{tpu_custom_call.1} parent=1 // pred_region
      _
    $region13: #{tpu_custom_call.1} parent=1 // pred_fallthru
      _
    %v15 = vld [vmem:[%s0] sm:$0xff]
    %v16 = vld [vmem:[%s1] sm:$0xff]
    %v17 = vld [vmem:[%s2] sm:$0xff]
    %v18 = vld [vmem:[%s2 + $0x8] sm:$0xff]
    %v19 = vadd.f32 %v17, %v18
    %20 = vadd.xlane.f32.xlu0 %v19
    %v21 = vpop.xlane.xlu0 %20
    %v22 = vrcp.pop 256.0
    %v23 = vmul.f32 %v21, %v22
    %v24 = vsub.f32 %v17, %v23
    %v25 = vsub.f32 %v18, %v23
    %v26 = vmul.f32 %v24, %v24
    %v27 = vmul.f32 %v25, %v25
    %v28 = vadd.f32 %v26, %v27
    %29 = vadd.xlane.f32.xlu0 %v28
    %v30 = vpop.xlane.xlu0 %29
    %v31 = vmul.f32 %v30, %v22
    %v32 = vadd.f32 %v31, 1e-05
    %v33 = vrsqrt.pop %v32
    %v34 = vmul.f32 %v15, %v33
    %v35 = vmul.f32 %v23, %v34
    %v36 = vsub.f32 %v16, %v35
    %38 = vset.pattern.permute.xlu0 0
    %39 = vperm.xlu0 %38, %v34
    %v40 = vpop.permute.xlu0 %39
    %v42 = vmul.f32 %v17, %v40
    %v43 = vmul.f32 %v18, %v40
    %45 = vset.pattern.permute.xlu0 0
    %46 = vperm.xlu0 %45, %v36
    %v47 = vpop.permute.xlu0 %46
    %v49 = vadd.f32 %v42, %v47
    %v50 = vadd.f32 %v43, %v47
    %51 = vst [vmem:[#allocation2] sm:$0xff] %v49
    %52 = vst [vmem:[#allocation2 + $0x8] sm:$0xff] %v50
    // Predicated region
    $region14: #{tpu_custom_call.1} parent=1 // pred_check
      _
    $region15: #{tpu_custom_call.1} parent=1 // pred_check_branch
      %54 = sbr.rel (0) target = $region17
    $region16: #{tpu_custom_call.1} parent=1 // pred_region
      %s56 = ssub.s32 256, 256
      %57 = vsyncadd [#allocation3], %s56
      %s59 = sshll.u32 [#allocation2], 4
      %s60 = int_to_ptr.vmem [resolvable:$true] %s59
      %62 = dma.vmem_to_hbm [thread:$0]  %s60, 256, %s3, [#allocation3]
    $region17: #{tpu_custom_call.1} parent=1 // pred_fallthru
      _
    // Predicated region
    $region18: #{tpu_custom_call.1} parent=1 // pred_check
      _
    $region19: #{tpu_custom_call.1} parent=1 // pred_check_branch
      %64 = sbr.rel (0) target = $region21
    $region20: #{tpu_custom_call.1} parent=1 // pred_region
      %65 = dma.done [#allocation3], 256
    $region21: #{tpu_custom_call.1} parent=1 // pred_fallthru
      _
    %66 = vsyncpa [#allocation3], 1

</llo_original>
